<compile_context>
chip_gen: v5e
topology: v5e:2x2
jax: 0.10.0
libtpu: 0.0.40
codegen_flags: <defaults>
</compile_context>

<pallas_src>
import jax
import jax.numpy as jnp
from jax.experimental import pallas as pl
from jax.experimental.pallas import tpu as pltpu


def _round_up(x, m):
    return ((x + m - 1) // m) * m


def _make_cross_kernel(width, padded_width):
    """Kernel body factory; masks lanes >= width when the lane block is padded."""
    need_mask = padded_width != width

    def kernel(bias_ref, x0_ref, x1_ref, w_ref, out_ref):
        # bias_ref: SMEM (1,) scalar
        # x0_ref, x1_ref, out_ref: VMEM (tb, Wp)
        # w_ref: VMEM (1, Wp) -- resident (constant index_map)
        x0 = x0_ref[...]
        x1 = x1_ref[...]
        w = w_ref[...]                          # (1, Wp) broadcasts over rows
        b = bias_ref[0]

        prod = x1 * w
        if need_mask:
            # Lanes >= width of a clipped edge block are un-DMA'd stale VMEM
            # (possibly NaN/Inf) -> select them out of the reduction.
            lane = jax.lax.broadcasted_iota(jnp.int32, prod.shape, 1)
            prod = jnp.where(lane < width, prod, 0.0)

        s = jnp.sum(prod, axis=1, keepdims=True)    # row-wise <x1, w> -> (tb, 1)
        out_ref[...] = x0 * s + b + x1

    return kernel


def _vmem_capacity_bytes():
    try:
        return int(pltpu.get_tpu_info().vmem_capacity_bytes)
    except Exception:
        return 128 << 20   # v5e/v6e default


def cross_forward(x0, x1, w, bias, *, tb=None):
    """Compute (x0, x2) where x2 = x0 * <x1, w> + bias + x1.

    x0, x1 : (B, W) float32
    w      : (W,)   float32
    bias   : (1,)   float32
    """
    B, W = x0.shape
    assert x1.shape == (B, W)
    itemsize = jnp.dtype(x0.dtype).itemsize

    # Lane-dense block width; inputs/outputs are NOT padded (edge block clipped).
    Wp = _round_up(W, 128)

    # Only w gets zero-padded (tiny, (1, Wp)).
    w2d = w.reshape(1, W)
    if Wp != W:
        w2d = jnp.pad(w2d, ((0, 0), (0, Wp - W)))

    # ---- generation-aware streamed-tile budget ----------------------------
    vmem_cap = _vmem_capacity_bytes()
    if vmem_cap >= (96 << 20):          # v5e / v6e: 128 MiB physical VMEM
        budget = 48 << 20
        limit_cap = 100 << 20
    else:                               # v7x: 64 MiB per TensorCore
        budget = 24 << 20
        limit_cap = 48 << 20

    # 3 streamed tiles (x0, x1, out) * 2 pipeline buffers * tb * Wp * itemsize
    max_tb = budget // (6 * Wp * itemsize)
    max_tb = max(8, (max_tb // 8) * 8)

    if tb is None:
        tb = min(4096, max_tb)
        # Give the "parallel" grid >= 4 steps on big batches so both v7x
        # TensorCores get work and the BlockSpec pipeline actually overlaps.
        tb = min(tb, max(512, _round_up(pl.cdiv(B, 4), 8)))
    tb = max(8, (min(tb, _round_up(B, 8)) // 8) * 8)

    grid = (pl.cdiv(B, tb),)

    # Explicit scoped-VMEM limit: actual footprint + headroom (v5e default is
    # only 16 MiB; v7x must keep margin under its 64 MiB physical VMEM).
    footprint = 6 * tb * Wp * itemsize + 2 * Wp * itemsize + 256
    vmem_limit = int(min(limit_cap, max(16 << 20, footprint + (8 << 20))))

    kernel = _make_cross_kernel(W, Wp)

    x2 = pl.pallas_call(
        kernel,
        out_shape=jax.ShapeDtypeStruct((B, W), x0.dtype),
        grid=grid,
        in_specs=[
            pl.BlockSpec(memory_space=pltpu.MemorySpace.SMEM),   # bias (whole array)
            pl.BlockSpec((tb, Wp), lambda i: (i, 0)),            # x0 tile
            pl.BlockSpec((tb, Wp), lambda i: (i, 0)),            # x1 tile
            pl.BlockSpec((1, Wp), lambda i: (0, 0)),             # w (resident)
        ],
        out_specs=pl.BlockSpec((tb, Wp), lambda i: (i, 0)),
        compiler_params=pltpu.CompilerParams(
            dimension_semantics=("parallel",),
            vmem_limit_bytes=vmem_limit,
        ),
        cost_estimate=pl.CostEstimate(
            flops=4 * B * W,
            transcendentals=0,
            bytes_accessed=3 * B * W * itemsize,
        ),
    )(bias, x0, x1, w2d)

    return x0, x2


def init_cross_params(width, key):
    """Deterministic parameter init mirroring the PyTorch module.

    bias = zeros((1,))
    w    = xavier_uniform on shape (1, width): bound = sqrt(6 / (width + 1))
    """
    bound = (6.0 / (width + 1)) ** 0.5
    w = jax.random.uniform(key, (width,), jnp.float32, minval=-bound, maxval=bound)
    bias = jnp.zeros((1,), jnp.float32)
    return w, bias


def _reference(x0, x1, w, bias):
    return x0 * jnp.sum(x1 * w[None, :], axis=1, keepdims=True) + bias + x1


if __name__ == "__main__":
    key = jax.random.PRNGKey(0)

    # Case 1: W not a multiple of 128, B not a multiple of 8 -> exercises both
    # clipped edge blocks and the in-kernel lane mask.
    # Case 2: aligned W -> exercises the unmasked fast path.
    cases = [(19, 96), (40, 128)]

    ok = True
    for B, W in cases:
        key, k_w, k_x0, k_x1 = jax.random.split(key, 4)
        w, bias = init_cross_params(W, k_w)
        x0 = jax.random.normal(k_x0, (B, W), jnp.float32)
        x1 = jax.random.normal(k_x1, (B, W), jnp.float32)

        out_x0, x2 = cross_forward(x0, x1, w, bias)
        jax.block_until_ready(x2)

        ref = _reference(x0, x1, w, bias)
        ok &= x2.shape == (B, W)
        ok &= bool(jnp.allclose(x2, ref, atol=1e-5, rtol=1e-5))
        ok &= bool(jnp.array_equal(out_x0, x0))

    assert ok, "mismatch vs reference"
    print("KERNEL_OK")
</pallas_src>

<mosaic_0001>
module attributes {stable_mosaic.version = 11 : i64} {
  func.func @kernel(%arg0: i32, %arg1: memref<1xf32, #tpu.memory_space<smem>>, %arg2: memref<24x128xf32, #tpu.memory_space<vmem>>, %arg3: memref<24x128xf32, #tpu.memory_space<vmem>>, %arg4: memref<1x128xf32, #tpu.memory_space<vmem>>, %arg5: memref<24x128xf32, #tpu.memory_space<vmem>>) attributes {dimension_semantics = [#tpu.dimension_semantics<parallel>], iteration_bounds = array<i64: 1>, scalar_prefetch = 0 : i64, scratch_operands = 0 : i64, tpu.core_type = #tpu.core_type<tc>, window_params = [{transform_indices = @transform_0, window_bounds = array<i64: 1>}, {transform_indices = @transform_1, window_bounds = array<i64: 24, 128>}, {transform_indices = @transform_2, window_bounds = array<i64: 24, 128>}, {pipeline_mode = #tpu.pipeline_mode<synchronous>, transform_indices = @transform_3, window_bounds = array<i64: 1, 128>}, {transform_indices = @transform_4, window_bounds = array<i64: 24, 128>}]} {
    %c0 = arith.constant 0 : index
    %c0_0 = arith.constant 0 : index
    %0 = vector.load %arg2[%c0, %c0_0] : memref<24x128xf32, #tpu.memory_space<vmem>>, vector<24x128xf32>
    %c0_1 = arith.constant 0 : index
    %c0_2 = arith.constant 0 : index
    %1 = vector.load %arg3[%c0_1, %c0_2] : memref<24x128xf32, #tpu.memory_space<vmem>>, vector<24x128xf32>
    %c0_3 = arith.constant 0 : index
    %c0_4 = arith.constant 0 : index
    %2 = vector.load %arg4[%c0_3, %c0_4] : memref<1x128xf32, #tpu.memory_space<vmem>>, vector<1x128xf32>
    %c0_5 = arith.constant 0 : index
    %3 = memref.load %arg1[%c0_5] : memref<1xf32, #tpu.memory_space<smem>>
    %4 = vector.broadcast %2 : vector<1x128xf32> to vector<24x128xf32>
    %5 = arith.mulf %1, %4 : vector<24x128xf32>
    %6 = tpu.iota {dimensions = array<i32: 1>} : vector<24x128xi32>
    %c96_i32 = arith.constant 96 : i32
    %7 = vector.broadcast %c96_i32 : i32 to vector<24x128xi32>
    %8 = arith.cmpi slt, %6, %7 : vector<24x128xi32>
    %cst = arith.constant 0.000000e+00 : f32
    %9 = vector.broadcast %cst : f32 to vector<24x128xf32>
    %10 = arith.select %8, %5, %9 : vector<24x128xi1>, vector<24x128xf32>
    %cst_6 = arith.constant dense<0.000000e+00> : vector<24xf32>
    %11 = vector.multi_reduction <add>, %10, %cst_6 [1] : vector<24x128xf32> to vector<24xf32>
    %12 = vector.shape_cast %11 : vector<24xf32> to vector<24x1xf32>
    %13 = vector.broadcast %12 : vector<24x1xf32> to vector<24x128xf32>
    %14 = arith.mulf %0, %13 : vector<24x128xf32>
    %15 = vector.broadcast %3 : f32 to vector<24x128xf32>
    %16 = arith.addf %14, %15 : vector<24x128xf32>
    %17 = arith.addf %16, %1 : vector<24x128xf32>
    %c0_7 = arith.constant 0 : index
    %c0_8 = arith.constant 0 : index
    %18 = vector.load %arg5[%c0_7, %c0_8] : memref<24x128xf32, #tpu.memory_space<vmem>>, vector<24x128xf32>
    tpu.vector_store %arg5[%c0_7, %c0_8], %17 {strides = array<i32>} : memref<24x128xf32, #tpu.memory_space<vmem>>, vector<24x128xf32>,
    return
  }
  func.func @transform_0(%arg0: i32) -> i32 {
    %c0_i32 = arith.constant 0 : i32
    %c0_i32_0 = arith.constant 0 : i32
    return %c0_i32 : i32
  }
  func.func @transform_1(%arg0: i32) -> (i32, i32) {
    %c0_i32 = arith.constant 0 : i32
    %c0_i32_0 = arith.constant 0 : i32
    return %arg0, %c0_i32 : i32, i32
  }
  func.func @transform_2(%arg0: i32) -> (i32, i32) {
    %c0_i32 = arith.constant 0 : i32
    %c0_i32_0 = arith.constant 0 : i32
    return %arg0, %c0_i32 : i32, i32
  }
  func.func @transform_3(%arg0: i32) -> (i32, i32) {
    %c0_i32 = arith.constant 0 : i32
    %c0_i32_0 = arith.constant 0 : i32
    %c0_i32_1 = arith.constant 0 : i32
    return %c0_i32, %c0_i32_0 : i32, i32
  }
  func.func @transform_4(%arg0: i32) -> (i32, i32) {
    %c0_i32 = arith.constant 0 : i32
    %c0_i32_0 = arith.constant 0 : i32
    return %arg0, %c0_i32 : i32, i32
  }
}

</mosaic_0001>

<llo_original>
// kernel: tpu_custom_call.1
$region0: #{tpu_custom_call.1}
  #allocation0 [shape = 'u32[]', space=smem, size = 0x4, offset = 0x4, fixed_abs, tag = 'smem constant byte address 0x4 - core index']
  #allocation1 [shape = 'u32[72,128]{1,0:T(1,128)}', space=vmem, size = 0x9000, scoped, tag = 'internal scratch']
  #allocation2 [shape = 'f32[1]{0:T(128)S(6)}', space=smem, size = 0x200, scoped, tag = 'scoped memory for tpu_custom_call.1']
  %s0 = inlined_call_operand.<no memory space> [shape: f32[1], index: 0, kind: input, shape index: {}]
  %s1 = inlined_call_operand.hbm [shape: f32[19,96], index: 1, kind: input, shape index: {}]
  %s2 = inlined_call_operand.hbm [shape: f32[19,96], index: 2, kind: input, shape index: {}]
  %s3 = inlined_call_operand.vmem [shape: f32[1,128], index: 3, kind: input, shape index: {}]
  %s4 = inlined_call_operand.hbm [shape: f32[19,96], index: 4, kind: output, shape index: {}]
  %s5 = sld [smem:[#allocation0]]
  $region34: #{tpu_custom_call.1} parent=0
    _
  %s7 = ssub.s32 1, %s5
  %s8 = scalar_select 0, %s7, %s5
  %9 = sst [smem:[#allocation2]] %s0
  $region1: #{tpu_custom_call.1} parent=0
    #allocation3 [shape = 'u8[12288]{0}', space=vmem, size = 0x3000, scoped, tag = 'input window, operand 1, single buffered']
    #allocation4 [shape = 's32[1]{0}', space=sflag, size = 0x4, scoped, tag = 'scoped memory for tpu_custom_call.1']
    #allocation5 [shape = 's32[1]{0}', space=sflag, size = 0x4, scoped, tag = 'scoped memory for tpu_custom_call.1']
    #allocation6 [shape = 'u8[12288]{0}', space=vmem, size = 0x3000, scoped, tag = 'input window, operand 2, single buffered']
    #allocation7 [shape = 's32[1]{0}', space=sflag, size = 0x4, scoped, tag = 'scoped memory for tpu_custom_call.1']
    #allocation8 [shape = 'u8[12288]{0}', space=vmem, size = 0x3000, scoped, tag = 'output window, operand 0, single buffered']
    %10 = vsyncpa [#allocation4], 0
    %11 = vsyncpa [#allocation7], 0
    %12 = vsyncpa [#allocation5], 0
    // Predicated region
    $region2: #{tpu_custom_call.1} parent=1 // pred_check
      _
    $region3: #{tpu_custom_call.1} parent=1 // pred_check_branch
      %14 = sbr.rel (0) target = $region5
    $region4: #{tpu_custom_call.1} parent=1 // pred_region
      _
    $region5: #{tpu_custom_call.1} parent=1 // pred_fallthru
      _
    // Predicated region
    $region6: #{tpu_custom_call.1} parent=1 // pred_check
      _
    $region7: #{tpu_custom_call.1} parent=1 // pred_check_branch
      %16 = sbr.rel (0) target = $region9
    $region8: #{tpu_custom_call.1} parent=1 // pred_region
      %18 = vsyncadd [#allocation4], 0
      %s19 = sshll.u32 %s1, 4
      %s20 = int_to_ptr.hbm [resolvable:$true] %s19
      %s21 = sshll.u32 [#allocation3], 4
      %s22 = int_to_ptr.vmem [resolvable:$true] %s21
      %27 = dma.hbm_to_vmem [thread:$0]  %s20, 384, %s22, [#allocation4], 128, 128, 8
    $region9: #{tpu_custom_call.1} parent=1 // pred_fallthru
      _
    // Predicated region
    $region10: #{tpu_custom_call.1} parent=1 // pred_check
      _
    $region11: #{tpu_custom_call.1} parent=1 // pred_check_branch
      %29 = sbr.rel (0) target = $region13
    $region12: #{tpu_custom_call.1} parent=1 // pred_region
      %31 = vsyncadd [#allocation7], 0
      %s32 = sshll.u32 %s2, 4
      %s33 = int_to_ptr.hbm [resolvable:$true] %s32
      %s34 = sshll.u32 [#allocation6], 4
      %s35 = int_to_ptr.vmem [resolvable:$true] %s34
      %40 = dma.hbm_to_vmem [thread:$0]  %s33, 384, %s35, [#allocation7], 128, 128, 8
    $region13: #{tpu_custom_call.1} parent=1 // pred_fallthru
      _
    // Predicated region
    $region14: #{tpu_custom_call.1} parent=1 // pred_check
      _
    $region15: #{tpu_custom_call.1} parent=1 // pred_check_branch
      %42 = sbr.rel (0) target = $region17
    $region16: #{tpu_custom_call.1} parent=1 // pred_region
      _
    $region17: #{tpu_custom_call.1} parent=1 // pred_fallthru
      _
    // Predicated region
    $region18: #{tpu_custom_call.1} parent=1 // pred_check
      _
    $region19: #{tpu_custom_call.1} parent=1 // pred_check_branch
      %44 = sbr.rel (0) target = $region21
    $region20: #{tpu_custom_call.1} parent=1 // pred_region
      %46 = dma.done [#allocation4], 384
    $region21: #{tpu_custom_call.1} parent=1 // pred_fallthru
      _
    // Predicated region
    $region22: #{tpu_custom_call.1} parent=1 // pred_check
      _
    $region23: #{tpu_custom_call.1} parent=1 // pred_check_branch
      %48 = sbr.rel (0) target = $region25
    $region24: #{tpu_custom_call.1} parent=1 // pred_region
      %50 = dma.done [#allocation7], 384
    $region25: #{tpu_custom_call.1} parent=1 // pred_fallthru
      _
    %v51 = vld [vmem:[#allocation3] sm:$0xff]
    %v52 = vld [vmem:[#allocation3 + $0x8] sm:$0xff]
    %v53 = vld [vmem:[#allocation3 + $0x10] sm:$0xff]
    %v54 = vld [vmem:[#allocation6] sm:$0xff]
    %v55 = vld [vmem:[#allocation6 + $0x8] sm:$0xff]
    %v56 = vld [vmem:[#allocation6 + $0x10] sm:$0xff]
    %v57 = vld [vmem:[%s3] sm:$0x1]
    %s58 = sld [smem:[#allocation2]]
    %v60 = vperm.slane %v57, 0
    %v62 = vmul.f32 %v54, %v60
    %v63 = vmul.f32 %v55, %v60
    %v64 = vmul.f32 %v56, %v60
    %v65 = vlaneseq
    %v66 = vand.u32 %v65, 127
    %vm67 = vcmp.lt.s32.totalorder %v66, 96
    %v68 = vsel %vm67, %v62, 0.0
    %v69 = vsel %vm67, %v63, 0.0
    %v70 = vsel %vm67, %v64, 0.0
    %71 = vadd.xlane.f32.xlu0 %v68
    %v72 = vpop.xlane.xlu0 %71
    %73 = vadd.xlane.f32.xlu0 %v69
    %v74 = vpop.xlane.xlu0 %73
    %75 = vadd.xlane.f32.xlu0 %v70
    %v76 = vpop.xlane.xlu0 %75
    %v77 = vmul.f32 %v51, %v72
    %v78 = vmul.f32 %v52, %v74
    %v79 = vmul.f32 %v53, %v76
    %v80 = vstv %s58
    %v81 = vadd.f32 %v77, %v80
    %v82 = vadd.f32 %v78, %v80
    %v83 = vadd.f32 %v79, %v80
    %v84 = vadd.f32 %v81, %v54
    %v85 = vadd.f32 %v82, %v55
    %v86 = vadd.f32 %v83, %v56
    %87 = vst [vmem:[#allocation8] sm:$0xff] %v84
    %88 = vst [vmem:[#allocation8 + $0x8] sm:$0xff] %v85
    %89 = vst [vmem:[#allocation8 + $0x10] sm:$0xff] %v86
    // Predicated region
    $region26: #{tpu_custom_call.1} parent=1 // pred_check
      _
    $region27: #{tpu_custom_call.1} parent=1 // pred_check_branch
      %91 = sbr.rel (0) target = $region29
    $region28: #{tpu_custom_call.1} parent=1 // pred_region
      %93 = vsyncadd [#allocation5], 0
      %s94 = sshll.u32 [#allocation8], 4
      %s95 = int_to_ptr.vmem [resolvable:$true] %s94
      %s96 = sshll.u32 %s4, 4
      %s97 = int_to_ptr.hbm [resolvable:$true] %s96
      %102 = dma.vmem_to_hbm [thread:$0]  %s95, 384, %s97, [#allocation5], 128, 128, 8
    $region29: #{tpu_custom_call.1} parent=1 // pred_fallthru
      _
    // Predicated region
    $region30: #{tpu_custom_call.1} parent=1 // pred_check
      _
    $region31: #{tpu_custom_call.1} parent=1 // pred_check_branch
      %104 = sbr.rel (0) target = $region33
    $region32: #{tpu_custom_call.1} parent=1 // pred_region
      %106 = dma.done [#allocation5], 384
    $region33: #{tpu_custom_call.1} parent=1 // pred_fallthru
      _
    %107 = vsyncpa [#allocation4], 1
    %108 = vsyncpa [#allocation7], 1
    %109 = vsyncpa [#allocation5], 1

</llo_original>
